<compile_context>
chip_gen: v7x
topology: tpu7x:2x2x1
jax: 0.10.0
libtpu: 0.0.40
codegen_flags: <defaults>
</compile_context>

<pallas_src>
from functools import partial

import jax
import jax.numpy as jnp
from jax import lax
from jax.experimental import pallas as pl
from jax.experimental.pallas import tpu as pltpu


# -----------------------------------------------------------------------------
# generation-aware tiling parameters
# -----------------------------------------------------------------------------
def _tpu_generation() -> str:
    try:
        kind = jax.devices()[0].device_kind.lower()
    except Exception:
        return "unknown"
    if "v5 lite" in kind or "v5e" in kind or "v5lite" in kind:
        return "v5e"
    if "v6" in kind:
        return "v6e"
    if "v7" in kind or "7x" in kind:
        return "v7x"
    return "unknown"


_GEN = _tpu_generation()
# normalize: bytes per (rows, dim) tile.  Double-buffered in+out stays well under
# the scoped-VMEM default (16 MiB on v5e, 32 MiB on v6e/v7x).
_NORM_TILE_BYTES = {"v5e": 2 << 20, "v6e": 4 << 20, "v7x": 4 << 20}.get(_GEN, 2 << 20)
# transpose: square block side; 512x512 f32 = 1 MiB/block (4 MiB double-buffered).
_TRANSPOSE_BLOCK = {"v5e": 256, "v6e": 512, "v7x": 512}.get(_GEN, 256)


def _pick_tile(full: int, preferred: int, align: int) -> int:
    """Largest multiple of `align` <= min(full, preferred) (at least `align`);
    the ragged last block is handled by a cdiv grid.  Returns `full` when
    full <= align (a full-extent block dim is always legal)."""
    if full <= align:
        return full
    cand = min(full, preferred)
    cand -= cand % align
    return max(cand, align)


# -----------------------------------------------------------------------------
# Kernel 1: row-wise L2 normalization (F.normalize(x, dim=-1))
# -----------------------------------------------------------------------------
def _normalize_kernel(x_ref, o_ref):
    x = x_ref[...]
    sumsq = jnp.sum(x * x, axis=-1, keepdims=True)
    # F.normalize: x / max(||x||, 1e-12)  ==  x * rsqrt(max(||x||^2, 1e-24)).
    # rsqrt lowers to the EUP slot -> essentially free next to the VPU multiply.
    o_ref[...] = x * lax.rsqrt(jnp.maximum(sumsq, 1e-24))


def l2_normalize_rows(x):
    n, d = x.shape
    target_rows = max(8, _NORM_TILE_BYTES // max(1, d * x.dtype.itemsize))
    # keep >= 2 grid steps whenever possible so both v7x TensorCores get work
    if n >= 16:
        half = ((n + 1) // 2 + 7) // 8 * 8
        target_rows = min(target_rows, half)
    tile_rows = _pick_tile(n, target_rows, 8)
    return pl.pallas_call(
        _normalize_kernel,
        out_shape=jax.ShapeDtypeStruct((n, d), x.dtype),
        grid=(pl.cdiv(n, tile_rows),),                        # ragged last block OK
        in_specs=[pl.BlockSpec((tile_rows, d), lambda i: (i, 0))],
        out_specs=pl.BlockSpec((tile_rows, d), lambda i: (i, 0)),
        compiler_params=pltpu.CompilerParams(dimension_semantics=("parallel",)),
    )(x)


# -----------------------------------------------------------------------------
# Kernel 2: bank transpose (num_features, dim) -> (dim, num_features)
#           (used only to build the cache at init; updates are incremental)
# -----------------------------------------------------------------------------
def _transpose_kernel(x_ref, o_ref):
    o_ref[...] = x_ref[...].T


def bank_transpose(x):
    n, d = x.shape
    # 128-aligned block sides -> lane-dense (unmasked) stores on the output side.
    tm = _pick_tile(n, _TRANSPOSE_BLOCK, 128)
    tn = _pick_tile(d, _TRANSPOSE_BLOCK, 128)
    return pl.pallas_call(
        _transpose_kernel,
        out_shape=jax.ShapeDtypeStruct((d, n), x.dtype),
        grid=(pl.cdiv(n, tm), pl.cdiv(d, tn)),                # ragged last blocks OK
        in_specs=[pl.BlockSpec((tm, tn), lambda i, j: (i, j))],
        out_specs=pl.BlockSpec((tn, tm), lambda i, j: (j, i)),
        compiler_params=pltpu.CompilerParams(
            dimension_semantics=("parallel", "parallel")),
    )(x)


# -----------------------------------------------------------------------------
# Kernel 3: dequeue_and_enqueue (in-place, HBM-resident bank, HBM-resident batch)
#   non-wrap: bank[ptr:ptr+B]   = batch              (n_write = B)
#   wrap:     bank[ptr:size]    = batch[:size-ptr]   (n_write = size - ptr)
#   n_write is static because the pointer is mirrored host-side.
# -----------------------------------------------------------------------------
def _enqueue_kernel(n_write, ptr_align, ptr_ref, batch_hbm, bank_in_hbm, bank_out_hbm):
    # bank_out_hbm aliases bank_in_hbm (input_output_aliases): only the n_write
    # enqueued rows are DMA'd HBM->HBM; the rest of the bank never moves.
    del bank_in_hbm
    ptr = ptr_ref[0]
    if ptr_align > 1:
        ptr = pl.multiple_of(ptr, ptr_align)   # sublane-aligned destination slab
    pltpu.sync_copy(batch_hbm.at[pl.ds(0, n_write), :],
                    bank_out_hbm.at[pl.ds(ptr, n_write), :])


@partial(jax.jit, static_argnums=(3, 4), donate_argnums=(0,))
def _enqueue_rows(bank, batch, ptr_arr, n_write, ptr_align):
    size, d = bank.shape
    return pl.pallas_call(
        partial(_enqueue_kernel, n_write, ptr_align),
        out_shape=jax.ShapeDtypeStruct((size, d), bank.dtype),
        in_specs=[
            pl.BlockSpec(memory_space=pltpu.MemorySpace.SMEM),   # ptr scalar
            pl.BlockSpec(memory_space=pl.ANY),                   # batch stays in HBM
            pl.BlockSpec(memory_space=pl.ANY),                   # bank stays in HBM
        ],
        out_specs=pl.BlockSpec(memory_space=pl.ANY),             # new bank (aliased)
        input_output_aliases={2: 0},                             # bank -> new bank
    )(ptr_arr, batch, bank)


# -----------------------------------------------------------------------------
# Incremental column patch of the cached transposed bank.
# TODO(synk): ideally this would be a second HBM-aliased output of the enqueue
# pallas_call (one in-kernel DMA at a dynamic lane offset); it is kept as a
# donated in-place XLA dynamic_update_slice, which also writes only the
# (dim, n_write) window and is robust across TPU generations.
# -----------------------------------------------------------------------------
@partial(jax.jit, donate_argnums=(0,))
def _patch_bank_t_columns(bank_t, rows, ptr):
    cols = jnp.transpose(rows).astype(bank_t.dtype)             # (dim, n_write)
    zero = jnp.zeros((), jnp.int32)
    return lax.dynamic_update_slice(bank_t, cols, (zero, ptr))


# -----------------------------------------------------------------------------
# Module wrapper mirroring the PyTorch MemoryBankModule semantics
# -----------------------------------------------------------------------------
class MemoryBankModule:
    # lightly default; the reference forward() reads self.feature_dim_first
    # (and self.size[0]) without defining them in __init__.
    feature_dim_first = True

    def __init__(self, size: int = 4096):
        self.size = (size,)               # treated as (num_features,) in forward
        self.bank = None                  # lazily initialized on first forward
        self.bank_ptr = jnp.zeros((1,), jnp.int32)
        self._ptr = 0                     # host mirror of bank_ptr (deterministic)
        self._bank_t = None               # incrementally maintained (dim, num_features)
        self._pending = None              # (rows, ptr) patch not yet applied to _bank_t

    def _init_memory_bank(self, dim: int, key) -> None:
        # TODO(synk): torch.randn buffer init replaced by deterministic jax.random;
        # the one-time normalize + first transpose could be fused into one pallas_call.
        raw = jax.random.normal(key, (self.size[0], dim), dtype=jnp.float32)
        self.bank = l2_normalize_rows(raw)
        self._bank_t = bank_transpose(self.bank)
        self.bank_ptr = jnp.zeros((1,), jnp.int32)
        self._ptr = 0
        self._pending = None

    def _flush_bank_t(self) -> None:
        """Apply the pending (rows, ptr) column patch to the transposed cache."""
        if self._pending is not None and self._bank_t is not None:
            rows, ptr = self._pending
            self._bank_t = _patch_bank_t_columns(
                self._bank_t, rows, jnp.array(ptr, jnp.int32))
            self._pending = None

    def _dequeue_and_enqueue(self, batch) -> None:
        size = self.size[0]
        bsz = batch.shape[0]
        ptr = self._ptr
        wrap = ptr + bsz >= size
        n_write = (size - ptr) if wrap else bsz       # static: host-known pointer
        batch = batch.astype(self.bank.dtype)         # match torch assignment casting
        self._flush_bank_t()                          # keep at most one pending patch
        self.bank = _enqueue_rows(
            self.bank, batch, jnp.array([ptr], jnp.int32),
            n_write, 8 if ptr % 8 == 0 else 1)
        rows = batch if n_write == bsz else batch[:n_write]
        self._pending = (rows, ptr)                   # applied lazily at next forward
        self._ptr = 0 if wrap else ptr + bsz
        self.bank_ptr = jnp.array([self._ptr], jnp.int32)

    def forward(self, output, update: bool = False):
        if self.size[0] == 0:
            return output, None
        if self.bank is None:
            self._init_memory_bank(output.shape[-1], jax.random.PRNGKey(42))
        if self.feature_dim_first:
            self._flush_bank_t()          # bring cache up to date with the last enqueue
            bank = self._bank_t           # pre-update snapshot (this call's update is lazy)
        else:
            # snapshot only when an in-place enqueue follows (avoids a full-bank copy)
            bank = jnp.copy(self.bank) if update else self.bank
        if update:
            self._dequeue_and_enqueue(output)
        return output, bank


# -----------------------------------------------------------------------------
# Demo / smoke test
# -----------------------------------------------------------------------------
if __name__ == "__main__":
    key = jax.random.PRNGKey(0)
    B, D, SIZE = 8, 128, 60            # SIZE not a multiple of B -> partial wrap

    bkeys = jax.random.split(key, 9)
    batches = [jax.random.normal(k, (B, D), dtype=jnp.float32) for k in bkeys]

    mod = MemoryBankModule(size=SIZE)

    # pure-JAX reference of the torch module's state machine
    raw_ref = jax.random.normal(jax.random.PRNGKey(42), (SIZE, D), dtype=jnp.float32)
    ref_bank = raw_ref / jnp.maximum(
        jnp.sqrt(jnp.sum(raw_ref * raw_ref, axis=-1, keepdims=True)), 1e-12)
    ref_ptr = 0

    for step, batch in enumerate(batches):
        out, bank_t = mod.forward(batch, update=True)
        jax.block_until_ready(bank_t)
        assert out.shape == (B, D)
        assert bank_t.shape == (D, SIZE)
        # returned bank must equal the PRE-update reference bank, transposed
        assert bool(jnp.allclose(bank_t, ref_bank.T, atol=1e-5, rtol=1e-5)), f"step {step}"
        # advance the reference (torch _dequeue_and_enqueue semantics)
        if ref_ptr + B >= SIZE:
            n = SIZE - ref_ptr
            ref_bank = ref_bank.at[ref_ptr:].set(batch[:n])
            ref_ptr = 0
        else:
            ref_bank = ref_bank.at[ref_ptr:ref_ptr + B].set(batch)
            ref_ptr += B

    jax.block_until_ready(mod.bank)
    # 9 updates: 0->8->...->56 -> partial wrap (4 rows) -> 0 -> 8
    assert bool(jnp.allclose(mod.bank, ref_bank, atol=1e-5, rtol=1e-5))
    assert int(mod.bank_ptr[0]) == ref_ptr == 8

    # exact-boundary case (ptr + batch_size == size) must take the wrap path
    mod2 = MemoryBankModule(size=2 * B)                 # 16
    _, t0 = mod2.forward(batches[0], update=True)
    jax.block_until_ready(t0)
    _, t1 = mod2.forward(batches[1], update=True)
    jax.block_until_ready(t1)
    assert bool(jnp.allclose(t1[:, :B], batches[0].T, atol=1e-6))
    assert int(mod2.bank_ptr[0]) == 0                   # 8 + 8 >= 16 -> wrapped
    _, t2 = mod2.forward(batches[2], update=False)      # no update, no snapshot copy
    jax.block_until_ready(t2)
    assert bool(jnp.allclose(t2[:, :B], batches[0].T, atol=1e-6))
    assert bool(jnp.allclose(t2[:, B:], batches[1].T, atol=1e-6))

    print("KERNEL_OK")
</pallas_src>

<mosaic_0001>
module attributes {stable_mosaic.version = 11 : i64} {
  func.func @_normalize_kernel(%arg0: i32, %arg1: memref<32x128xf32, #tpu.memory_space<vmem>>, %arg2: memref<32x128xf32, #tpu.memory_space<vmem>>) attributes {dimension_semantics = [#tpu.dimension_semantics<parallel>], iteration_bounds = array<i64: 2>, scalar_prefetch = 0 : i64, scratch_operands = 0 : i64, tpu.core_type = #tpu.core_type<tc>, window_params = [{transform_indices = @transform_0, window_bounds = array<i64: 32, 128>}, {transform_indices = @transform_1, window_bounds = array<i64: 32, 128>}]} {
    %c0 = arith.constant 0 : index
    %c0_0 = arith.constant 0 : index
    %0 = vector.load %arg1[%c0, %c0_0] : memref<32x128xf32, #tpu.memory_space<vmem>>, vector<32x128xf32>
    %1 = arith.mulf %0, %0 : vector<32x128xf32>
    %cst = arith.constant dense<0.000000e+00> : vector<32xf32>
    %2 = vector.multi_reduction <add>, %1, %cst [1] : vector<32x128xf32> to vector<32xf32>
    %3 = vector.shape_cast %2 : vector<32xf32> to vector<32x1xf32>
    %cst_1 = arith.constant 1.000000e-24 : f32
    %4 = vector.broadcast %cst_1 : f32 to vector<32x1xf32>
    %5 = arith.maximumf %3, %4 : vector<32x1xf32>
    %6 = math.rsqrt %5 : vector<32x1xf32>
    %7 = vector.broadcast %6 : vector<32x1xf32> to vector<32x128xf32>
    %8 = arith.mulf %0, %7 : vector<32x128xf32>
    %c0_2 = arith.constant 0 : index
    %c0_3 = arith.constant 0 : index
    %9 = vector.load %arg2[%c0_2, %c0_3] : memref<32x128xf32, #tpu.memory_space<vmem>>, vector<32x128xf32>
    tpu.vector_store %arg2[%c0_2, %c0_3], %8 {strides = array<i32>} : memref<32x128xf32, #tpu.memory_space<vmem>>, vector<32x128xf32>,
    return
  }
  func.func @transform_0(%arg0: i32) -> (i32, i32) {
    %c0_i32 = arith.constant 0 : i32
    %c0_i32_0 = arith.constant 0 : i32
    return %arg0, %c0_i32 : i32, i32
  }
  func.func @transform_1(%arg0: i32) -> (i32, i32) {
    %c0_i32 = arith.constant 0 : i32
    %c0_i32_0 = arith.constant 0 : i32
    return %arg0, %c0_i32 : i32, i32
  }
}

</mosaic_0001>

<llo_original>
// kernel: tpu_custom_call.1
$region0: #{tpu_custom_call.1}
  #allocation0 [shape = 'u32[]', space=smem, size = 0x4, offset = 0x4, fixed_abs, tag = 'smem constant byte address 0x4 - core index']
  #allocation1 [shape = 'u32[144,128]{1,0:T(1,128)}', space=vmem, size = 0x12000, scoped, tag = 'internal scratch']
  %s0 = inlined_call_operand.hbm [shape: f32[60,128], index: 0, kind: input, shape index: {}]
  %s1 = inlined_call_operand.hbm [shape: f32[60,128], index: 1, kind: output, shape index: {}]
  %s2 = sld [smem:[#allocation0]]
  $region41: #{tpu_custom_call.1} parent=0
    _
  %s4 = ssub.s32 1, %s2
  %s5 = scalar_select 0, %s4, %s2
  $region1: #{tpu_custom_call.1} parent=0
    #allocation2 [shape = 'u8[32768]{0}', space=vmem, size = 0x8000, scoped, tag = 'input window, operand 0']
    #allocation3 [shape = 's32[2]{0}', space=sflag, size = 0x8, scoped, tag = 'scoped memory for tpu_custom_call.1']
    #allocation4 [shape = 's32[2]{0}', space=sflag, size = 0x8, scoped, tag = 'scoped memory for tpu_custom_call.1']
    #allocation5 [shape = 'u8[32768]{0}', space=vmem, size = 0x8000, scoped, tag = 'output window, operand 0']
    %6 = vsyncpa [#allocation3], 0
    %s7 = scalar_lea.sflag [#allocation3], 1
    %8 = vsyncpa %s7, 0
    %9 = vsyncpa [#allocation4], 0
    %s10 = scalar_lea.sflag [#allocation4], 1
    %11 = vsyncpa %s10, 0
    loop: start=0, step=1, limit=4
    $region2: #{tpu_custom_call.1} parent=1 // loop_pre_header
      _
    $region3: #{tpu_custom_call.1} parent=1 // loop_header
      %s13 = sphi 0, %s17
      %p14 = scmp.ge.s32.totalorder %s13, 4
      %s23 = sphi 0, %s25
      %s26 = sphi 0, %s23
      %s27 = sphi 0, %s26
      %s43 = sphi 0, %s27
      %s49 = sphi 0, %s51
      %s52 = sphi 0, %s49
      %s53 = sphi 0, %s52
      %s69 = sphi 0, %s53
    $region4: #{tpu_custom_call.1} parent=1 // loop_header_branch
      %16 = sbr.rel (%p14) target = $region8
    $region5: #{tpu_custom_call.1} parent=1 // loop_body
      %s18 = ssub.s32 %s13, 1
      %s19 = ssub.s32 %s13, 2
      %s20 = sadd.s32 %s13, 1
      %s21 = ssub.s32 %s13, %s20
      %p22 = scmp.eq.s32.totalorder %s21, 0
      %s24 = sadd.s32 %s23, 1
      %s25 = scalar_select %p22, %s23, %s24
      %p28 = pneg %p22
      %p29 = scmp.eq.s32.totalorder %s13, 1
      %p30 = por %p28, %p29
      %p31 = scmp.ne.s32.totalorder %s23, %s26
      %p32 = scmp.eq.s32.totalorder %s13, 0
      %p33 = por %p31, %p32
      %p34 = scmp.ne.s32.totalorder %s23, %s26
      %p35 = scmp.eq.s32.totalorder %s18, 1
      %p36 = por %p34, %p35
      %p37 = scmp.ne.s32.totalorder %s26, %s27
      %p38 = scmp.eq.s32.totalorder %s18, 0
      %p39 = por %p37, %p38
      %p40 = scmp.ne.s32.totalorder %s26, %s27
      %p41 = scmp.eq.s32.totalorder %s19, 1
      %p42 = por %p40, %p41
      %p44 = scmp.ne.s32.totalorder %s27, %s43
      %p45 = scmp.eq.s32.totalorder %s19, 0
      %p46 = por %p44, %p45
      %s47 = ssub.s32 %s13, %s20
      %p48 = scmp.eq.s32.totalorder %s47, 0
      %s50 = sadd.s32 %s49, 1
      %s51 = scalar_select %p48, %s49, %s50
      %p54 = pneg %p48
      %p55 = scmp.eq.s32.totalorder %s13, 1
      %p56 = por %p54, %p55
      %p57 = scmp.ne.s32.totalorder %s49, %s52
      %p58 = scmp.eq.s32.totalorder %s13, 0
      %p59 = por %p57, %p58
      %p60 = scmp.ne.s32.totalorder %s49, %s52
      %p61 = scmp.eq.s32.totalorder %s18, 1
      %p62 = por %p60, %p61
      %p63 = scmp.ne.s32.totalorder %s52, %s53
      %p64 = scmp.eq.s32.totalorder %s18, 0
      %p65 = por %p63, %p64
      %p66 = scmp.ne.s32.totalorder %s52, %s53
      %p67 = scmp.eq.s32.totalorder %s19, 1
      %p68 = por %p66, %p67
      %p70 = scmp.ne.s32.totalorder %s53, %s69
      %p71 = scmp.eq.s32.totalorder %s19, 0
      %p72 = por %p70, %p71
      %p73 = scmp.le.s32.totalorder 1, %s13
      %p74 = scmp.lt.s32.totalorder %s13, 3
      %p75 = pnand %p73, %p74
      %p76 = pneg %p75
      // Predicated region
      $region9: #{tpu_custom_call.1} parent=5 // pred_check
        _
      $region10: #{tpu_custom_call.1} parent=5 // pred_check_branch
        %78 = sbr.rel (%p75) target = $region12
      $region11: #{tpu_custom_call.1} parent=5 // pred_region
        %s79 = ssub.s32 %s13, 1
      $region12: #{tpu_custom_call.1} parent=5 // pred_fallthru
        _
      %p80 = scmp.lt.s32.totalorder %s13, 2
      // Predicated region
      $region13: #{tpu_custom_call.1} parent=5 // pred_check
        %p81 = pneg %p80
      $region14: #{tpu_custom_call.1} parent=5 // pred_check_branch
        %83 = sbr.rel (%p81) target = $region16
      $region15: #{tpu_custom_call.1} parent=5 // pred_region
        // Predicated region
        $region17: #{tpu_custom_call.1} parent=15 // pred_check
          %p84 = pneg %p33
        $region18: #{tpu_custom_call.1} parent=15 // pred_check_branch
          %86 = sbr.rel (%p84) target = $region20
        $region19: #{tpu_custom_call.1} parent=15 // pred_region
          %s87 = sand.u32 %s23, 1
          %s88 = scalar_lea.sflag [#allocation3], %s87
          %s89 = sand.u32 %s23, 1
          %s90 = smul.addr %s89, 32
          %s91 = scalar_lea.vmem [#allocation2], %s90
          %s92 = smul.u32 4, %s13
          %s94 = ssub.s32 512, 512
          %95 = vsyncadd %s88, %s94
          %s96 = smul.addr %s92, 128
          %s97 = scalar_lea.hbm %s0, %s96
          %s98 = sshll.u32 %s91, 4
          %s99 = int_to_ptr.vmem [resolvable:$true] %s98
          %104 = dma.hbm_to_vmem [thread:$0]  %s97, 512, %s99, %s88, 128, 128, 8
        $region20: #{tpu_custom_call.1} parent=15 // pred_fallthru
          _
      $region16: #{tpu_custom_call.1} parent=5 // pred_fallthru
        _
      %p105 = scmp.le.s32.totalorder 1, %s13
      %p106 = scmp.lt.s32.totalorder %s13, 3
      %p107 = pnand %p105, %p106
      %p108 = pneg %p107
      // Predicated region
      $region21: #{tpu_custom_call.1} parent=5 // pred_check
        _
      $region22: #{tpu_custom_call.1} parent=5 // pred_check_branch
        %110 = sbr.rel (%p107) target = $region24
      $region23: #{tpu_custom_call.1} parent=5 // pred_region
        %s111 = ssub.s32 %s13, 1
        %s112 = sand.u32 %s26, 1
        %s113 = scalar_lea.sflag [#allocation3], %s112
        %s114 = sand.u32 %s26, 1
        %s115 = smul.addr %s114, 32
        %s116 = scalar_lea.vmem [#allocation2], %s115
        // Predicated region
        $region25: #{tpu_custom_call.1} parent=23 // pred_check
          %p117 = pneg %p39
        $region26: #{tpu_custom_call.1} parent=23 // pred_check_branch
          %119 = sbr.rel (%p117) target = $region28
        $region27: #{tpu_custom_call.1} parent=23 // pred_region
          %120 = dma.done %s113, 512
        $region28: #{tpu_custom_call.1} parent=23 // pred_fallthru
          _
        %s121 = sand.u32 %s26, 1
        %s122 = scalar_lea.sflag [#allocation3], %s121
        %s123 = sand.u32 %s26, 1
        %s124 = smul.addr %s123, 32
        %s125 = scalar_lea.vmem [#allocation2], %s124
        %p126 = pneg %p39
        %p127 = pneg %p36
        %p128 = pneg %p65
        %p129 = pneg %p62
        %s130 = sand.u32 %s52, 1
        %s131 = scalar_lea.sflag [#allocation4], %s130
        %s132 = sand.u32 %s52, 1
        %s133 = smul.addr %s132, 32
        %s134 = scalar_lea.vmem [#allocation5], %s133
        %s135 = smul.u32 4, %s18
        %s136 = smul.u32 4, %s18
        %v137 = vld [vmem:[%s116] sm:$0xff]
        %v138 = vld [vmem:[%s116 + $0x8] sm:$0xff]
        %v139 = vld [vmem:[%s116 + $0x10] sm:$0xff]
        %v140 = vld [vmem:[%s116 + $0x18] sm:$0xff]
        %v141 = vmul.f32 %v137, %v137
        %v142 = vmul.f32 %v138, %v138
        %v143 = vmul.f32 %v139, %v139
        %v144 = vmul.f32 %v140, %v140
        %145 = vadd.xlane.f32.xlu0 %v141
        %v146 = vpop.xlane.xlu0 %145
        %147 = vadd.xlane.f32.xlu0 %v142
        %v148 = vpop.xlane.xlu0 %147
        %149 = vadd.xlane.f32.xlu0 %v143
        %v150 = vpop.xlane.xlu0 %149
        %151 = vadd.xlane.f32.xlu0 %v144
        %v152 = vpop.xlane.xlu0 %151
        %v153 = vmax.f32 %v146, 1e-24
        %v154 = vmax.f32 %v148, 1e-24
        %v155 = vmax.f32 %v150, 1e-24
        %v156 = vmax.f32 %v152, 1e-24
        %v157 = vrsqrt.pop %v153
        %v158 = vrsqrt.pop %v154
        %v159 = vrsqrt.pop %v155
        %v160 = vrsqrt.pop %v156
        %v161 = vmul.f32 %v137, %v157
        %v162 = vmul.f32 %v138, %v158
        %v163 = vmul.f32 %v139, %v159
        %v164 = vmul.f32 %v140, %v160
        %165 = vst [vmem:[%s134] sm:$0xff] %v161
        %166 = vst [vmem:[%s134 + $0x8] sm:$0xff] %v162
        %167 = vst [vmem:[%s134 + $0x10] sm:$0xff] %v163
        %168 = vst [vmem:[%s134 + $0x18] sm:$0xff] %v164
        %s169 = sand.u32 %s52, 1
        %s170 = scalar_lea.sflag [#allocation4], %s169
        %s171 = sand.u32 %s52, 1
        %s172 = smul.addr %s171, 32
        %s173 = scalar_lea.vmem [#allocation5], %s172
        // Predicated region
        $region29: #{tpu_custom_call.1} parent=23 // pred_check
          %p174 = pneg %p62
        $region30: #{tpu_custom_call.1} parent=23 // pred_check_branch
          %176 = sbr.rel (%p174) target = $region32
        $region31: #{tpu_custom_call.1} parent=23 // pred_region
          %s177 = smul.u32 4, %s18
          %s179 = ssub.s32 512, 512
          %180 = vsyncadd %s170, %s179
          %s181 = smul.addr %s177, 128
          %s182 = scalar_lea.hbm %s1, %s181
          %s183 = sshll.u32 %s173, 4
          %s184 = int_to_ptr.vmem [resolvable:$true] %s183
          %189 = dma.vmem_to_hbm [thread:$0]  %s184, 512, %s182, %s170, 128, 128, 8
        $region32: #{tpu_custom_call.1} parent=23 // pred_fallthru
          _
      $region24: #{tpu_custom_call.1} parent=5 // pred_fallthru
        _
      %p190 = scmp.le.s32.totalorder 2, %s13
      // Predicated region
      $region33: #{tpu_custom_call.1} parent=5 // pred_check
        %p191 = pneg %p190
      $region34: #{tpu_custom_call.1} parent=5 // pred_check_branch
        %193 = sbr.rel (%p191) target = $region36
      $region35: #{tpu_custom_call.1} parent=5 // pred_region
        %s194 = ssub.s32 %s13, 2
        // Predicated region
        $region37: #{tpu_custom_call.1} parent=35 // pred_check
          %p195 = pneg %p68
        $region38: #{tpu_custom_call.1} parent=35 // pred_check_branch
          %197 = sbr.rel (%p195) target = $region40
        $region39: #{tpu_custom_call.1} parent=35 // pred_region
          %s198 = sand.u32 %s53, 1
          %s199 = scalar_lea.sflag [#allocation4], %s198
          %s200 = sand.u32 %s53, 1
          %s201 = smul.addr %s200, 32
          %s202 = scalar_lea.vmem [#allocation5], %s201
          %203 = dma.done %s199, 512
        $region40: #{tpu_custom_call.1} parent=35 // pred_fallthru
          _
      $region36: #{tpu_custom_call.1} parent=5 // pred_fallthru
        _
    $region6: #{tpu_custom_call.1} parent=1 // loop_footer
      %s17 = sadd.s32 1, %s13
    $region7: #{tpu_custom_call.1} parent=1 // loop_footer_branch
      %12 = sbr.rel target = $region3
    $region8: #{tpu_custom_call.1} parent=1 // loop_exit
      _
    %204 = vsyncpa [#allocation3], 1
    %s205 = scalar_lea.sflag [#allocation3], 1
    %206 = vsyncpa %s205, 1
    %207 = vsyncpa [#allocation4], 1
    %s208 = scalar_lea.sflag [#allocation4], 1
    %209 = vsyncpa %s208, 1

</llo_original>
